<compile_context>
chip_gen: v7x
topology: tpu7x:2x2x1
jax: 0.10.0
libtpu: 0.0.40
codegen_flags: <defaults>
</compile_context>

<pallas_src>
import jax
import jax.numpy as jnp
from jax.experimental import pallas as pl
from jax.experimental.pallas import tpu as pltpu

# ------------------------- model dimensions (small) -------------------------
B = 2                      # batch
C, H, W = 4, 8, 8          # NCHW observation
OBS_DIM = C * H * W        # 256 after flatten
FEATURES_DIM = 128         # synthetic features extractor output size (lane-dense)
SHARED = (256, 128)        # shared net_arch ints
PI = (64, 64)              # actor arch
VF = (64, 64)              # critic arch
N_ACTIONS = 6              # Discrete(n=6) -> actor out size
HEAD_PAD = 128             # fused head width: actor lanes 0..5, critic lane 64
CRITIC_LANE = 64           # lane holding the value estimate in the fused output
SUBLANE = 8                # f32 sublane granularity (batch padding)


def _relu(v):
    return jnp.maximum(v, 0.0)


def actor_critic_kernel(
    x_ref,
    wf_ref, bf_ref,
    w1_ref, b1_ref, w2_ref, b2_ref,
    wh1_ref, bh1_ref, wh2_ref, bh2_ref, wh3_ref, bh3_ref,
    out_ref,
):
    def _linear(x, w_ref, b_ref):
        # weights stored bf16 (halved HBM DMA); promote to f32 for the dot so
        # activations stay f32 on all generations (v5e VPU has no bf16 path).
        w = w_ref[...].astype(jnp.float32)
        return jnp.dot(x, w, preferred_element_type=jnp.float32) + b_ref[...]

    x = x_ref[...]

    # features_network: flatten (done in wrapper) + Linear + ReLU
    feat = _relu(_linear(x, wf_ref, bf_ref))

    # shared_net: Linear -> ReLU -> Linear, then __output_activation (ReLU)
    h = _relu(_linear(feat, w1_ref, b1_ref))
    shared = _relu(_linear(h, w2_ref, b2_ref))

    # fused actor+critic heads: 3 matmuls, both paths side by side in lanes.
    h1 = _relu(_linear(shared, wh1_ref, bh1_ref))   # [actor1 | critic1]
    h2 = _relu(_linear(h1, wh2_ref, bh2_ref))       # block-diagonal keeps paths separate
    out_ref[...] = _linear(h2, wh3_ref, bh3_ref)    # logits lanes 0..5, value lane 64


def init_params(key):
    """Deterministic synthetic parameters.

    Per-layer weights are drawn as (in, out) f32; the two heads are then packed
    into fused (128, 128) weights and all weights are cast to bf16.  Biases
    stay f32.
    """
    dims = [
        ("wf", OBS_DIM, FEATURES_DIM),
        ("w1", FEATURES_DIM, SHARED[0]),
        ("w2", SHARED[0], SHARED[1]),
        ("wa1", SHARED[1], PI[0]),
        ("wa2", PI[0], PI[1]),
        ("wa3", PI[1], N_ACTIONS),
        ("wc1", SHARED[1], VF[0]),
        ("wc2", VF[0], VF[1]),
        ("wc3", VF[1], 1),
    ]
    raw = {}
    keys = jax.random.split(key, len(dims) * 2)
    for i, (name, din, dout) in enumerate(dims):
        raw[name] = 0.05 * jax.random.normal(keys[2 * i], (din, dout), jnp.float32)
        raw["b" + name[1:]] = 0.01 * jax.random.normal(keys[2 * i + 1], (1, dout), jnp.float32)

    # --- pack the two heads into fused lane-dense weights -------------------
    A0, A1 = PI
    V0, V1 = VF
    # layer 1: concat along output lanes -> (128, A0+V0) = (128, 128)
    wh1 = jnp.concatenate([raw["wa1"], raw["wc1"]], axis=1)
    bh1 = jnp.concatenate([raw["ba1"], raw["bc1"]], axis=1)
    # layer 2: block-diagonal -> (128, 128)
    wh2 = jnp.zeros((A0 + V0, A1 + V1), jnp.float32)
    wh2 = wh2.at[:A0, :A1].set(raw["wa2"]).at[A0:, A1:].set(raw["wc2"])
    bh2 = jnp.concatenate([raw["ba2"], raw["bc2"]], axis=1)
    # layer 3: actor logits in lanes 0..N_ACTIONS-1, value in lane CRITIC_LANE
    wh3 = jnp.zeros((A1 + V1, HEAD_PAD), jnp.float32)
    wh3 = wh3.at[:A1, :N_ACTIONS].set(raw["wa3"])
    wh3 = wh3.at[A1:, CRITIC_LANE:CRITIC_LANE + 1].set(raw["wc3"])
    bh3 = jnp.zeros((1, HEAD_PAD), jnp.float32)
    bh3 = bh3.at[:, :N_ACTIONS].set(raw["ba3"])
    bh3 = bh3.at[:, CRITIC_LANE:CRITIC_LANE + 1].set(raw["bc3"])

    params = {
        "wf": raw["wf"], "bf": raw["bf"],
        "w1": raw["w1"], "b1": raw["b1"],
        "w2": raw["w2"], "b2": raw["b2"],
        "wh1": wh1, "bh1": bh1,
        "wh2": wh2, "bh2": bh2,
        "wh3": wh3, "bh3": bh3,
    }
    # bf16 weights (halve weight DMA); f32 biases.
    for k in list(params):
        if k.startswith("w"):
            params[k] = params[k].astype(jnp.bfloat16)
    # keep raw (unpacked) layer params around for the pure-JAX reference.
    params["_raw"] = raw
    return params


PARAM_ORDER = [
    "wf", "bf",
    "w1", "b1", "w2", "b2",
    "wh1", "bh1", "wh2", "bh2", "wh3", "bh3",
]


def actor_critic_forward(x_nchw, params):
    """Returns (actor_logits (B, N_ACTIONS), critic_value (B, 1))."""
    b0 = x_nchw.shape[0]
    x = x_nchw.reshape(b0, -1).astype(jnp.float32)  # flatten NCHW row-major
    # pad batch (sublane dim) to a multiple of 8 for full-width stores
    b_pad = ((b0 + SUBLANE - 1) // SUBLANE) * SUBLANE
    if b_pad != b0:
        x = jnp.pad(x, ((0, b_pad - b0), (0, 0)))

    flat_params = [params[k] for k in PARAM_ORDER]
    vmem = pl.BlockSpec(memory_space=pltpu.MemorySpace.VMEM)

    out = pl.pallas_call(
        actor_critic_kernel,
        out_shape=jax.ShapeDtypeStruct((b_pad, HEAD_PAD), jnp.float32),
        in_specs=[vmem] * (1 + len(flat_params)),
        out_specs=vmem,
    )(x, *flat_params)

    actor_logits = out[:b0, :N_ACTIONS]
    critic_value = out[:b0, CRITIC_LANE:CRITIC_LANE + 1]
    return actor_logits, critic_value


def _reference_forward(x_nchw, params):
    """Pure-JAX reference, using the same bf16-rounded weights as the kernel."""
    raw = params["_raw"]
    w = lambda k: raw[k].astype(jnp.bfloat16).astype(jnp.float32)
    b = lambda k: raw[k]
    x = x_nchw.reshape(x_nchw.shape[0], -1).astype(jnp.float32)
    relu = lambda v: jnp.maximum(v, 0.0)
    feat = relu(x @ w("wf") + b("bf"))
    h = relu(feat @ w("w1") + b("b1"))
    shared = relu(h @ w("w2") + b("b2"))
    a = relu(shared @ w("wa1") + b("ba1"))
    a = relu(a @ w("wa2") + b("ba2"))
    actor = a @ w("wa3") + b("ba3")
    c = relu(shared @ w("wc1") + b("bc1"))
    c = relu(c @ w("wc2") + b("bc2"))
    critic = c @ w("wc3") + b("bc3")
    return actor, critic


if __name__ == "__main__":
    key = jax.random.PRNGKey(0)
    k_obs, k_par = jax.random.split(key)
    x = jax.random.normal(k_obs, (B, C, H, W), jnp.float32)
    params = init_params(k_par)

    actor_logits, critic_value = actor_critic_forward(x, params)
    jax.block_until_ready((actor_logits, critic_value))

    ref_actor, ref_critic = _reference_forward(x, params)
    assert actor_logits.shape == (B, N_ACTIONS)
    assert critic_value.shape == (B, 1)
    assert jnp.allclose(actor_logits, ref_actor, atol=2e-3, rtol=2e-3)
    assert jnp.allclose(critic_value, ref_critic, atol=2e-3, rtol=2e-3)

    print("KERNEL_OK")
</pallas_src>

<mosaic_0001>
module attributes {stable_mosaic.version = 11 : i64} {
  func.func @actor_critic_kernel(%arg0: memref<8x256xf32, #tpu.memory_space<vmem>>, %arg1: memref<256x128xbf16, #tpu.memory_space<vmem>>, %arg2: memref<1x128xf32, #tpu.memory_space<vmem>>, %arg3: memref<128x256xbf16, #tpu.memory_space<vmem>>, %arg4: memref<1x256xf32, #tpu.memory_space<vmem>>, %arg5: memref<256x128xbf16, #tpu.memory_space<vmem>>, %arg6: memref<1x128xf32, #tpu.memory_space<vmem>>, %arg7: memref<128x128xbf16, #tpu.memory_space<vmem>>, %arg8: memref<1x128xf32, #tpu.memory_space<vmem>>, %arg9: memref<128x128xbf16, #tpu.memory_space<vmem>>, %arg10: memref<1x128xf32, #tpu.memory_space<vmem>>, %arg11: memref<128x128xbf16, #tpu.memory_space<vmem>>, %arg12: memref<1x128xf32, #tpu.memory_space<vmem>>, %arg13: memref<8x128xf32, #tpu.memory_space<vmem>>) attributes {dimension_semantics = [], scalar_prefetch = 0 : i64, scratch_operands = 0 : i64, tpu.core_type = #tpu.core_type<tc>} {
    %c0 = arith.constant 0 : index
    %c0_0 = arith.constant 0 : index
    %0 = vector.load %arg0[%c0, %c0_0] : memref<8x256xf32, #tpu.memory_space<vmem>>, vector<8x256xf32>
    %c0_1 = arith.constant 0 : index
    %c0_2 = arith.constant 0 : index
    %1 = vector.load %arg1[%c0_1, %c0_2] : memref<256x128xbf16, #tpu.memory_space<vmem>>, vector<256x128xbf16>
    %2 = arith.extf %1 : vector<256x128xbf16> to vector<256x128xf32>
    %cst = arith.constant dense<0.000000e+00> : vector<8x128xf32>
    %3 = tpu.matmul %0, %2, %cst {dimension_numbers = #tpu.dot_dimension_numbers<[1], [0], [0], [1], [0, 0, 1, 1], [], []>} : vector<8x256xf32>, vector<256x128xf32>, vector<8x128xf32> -> vector<8x128xf32>
    %c0_3 = arith.constant 0 : index
    %c0_4 = arith.constant 0 : index
    %4 = vector.load %arg2[%c0_3, %c0_4] : memref<1x128xf32, #tpu.memory_space<vmem>>, vector<1x128xf32>
    %5 = vector.broadcast %4 : vector<1x128xf32> to vector<8x128xf32>
    %6 = arith.addf %3, %5 : vector<8x128xf32>
    %cst_5 = arith.constant 0.000000e+00 : f32
    %7 = vector.broadcast %cst_5 : f32 to vector<8x128xf32>
    %8 = arith.maximumf %6, %7 : vector<8x128xf32>
    %c0_6 = arith.constant 0 : index
    %c0_7 = arith.constant 0 : index
    %9 = vector.load %arg3[%c0_6, %c0_7] : memref<128x256xbf16, #tpu.memory_space<vmem>>, vector<128x256xbf16>
    %10 = arith.extf %9 : vector<128x256xbf16> to vector<128x256xf32>
    %cst_8 = arith.constant dense<0.000000e+00> : vector<8x256xf32>
    %11 = tpu.matmul %8, %10, %cst_8 {dimension_numbers = #tpu.dot_dimension_numbers<[1], [0], [0], [1], [0, 0, 1, 1], [], []>} : vector<8x128xf32>, vector<128x256xf32>, vector<8x256xf32> -> vector<8x256xf32>
    %c0_9 = arith.constant 0 : index
    %c0_10 = arith.constant 0 : index
    %12 = vector.load %arg4[%c0_9, %c0_10] : memref<1x256xf32, #tpu.memory_space<vmem>>, vector<1x256xf32>
    %13 = vector.broadcast %12 : vector<1x256xf32> to vector<8x256xf32>
    %14 = arith.addf %11, %13 : vector<8x256xf32>
    %cst_11 = arith.constant 0.000000e+00 : f32
    %15 = vector.broadcast %cst_11 : f32 to vector<8x256xf32>
    %16 = arith.maximumf %14, %15 : vector<8x256xf32>
    %c0_12 = arith.constant 0 : index
    %c0_13 = arith.constant 0 : index
    %17 = vector.load %arg5[%c0_12, %c0_13] : memref<256x128xbf16, #tpu.memory_space<vmem>>, vector<256x128xbf16>
    %18 = arith.extf %17 : vector<256x128xbf16> to vector<256x128xf32>
    %cst_14 = arith.constant dense<0.000000e+00> : vector<8x128xf32>
    %19 = tpu.matmul %16, %18, %cst_14 {dimension_numbers = #tpu.dot_dimension_numbers<[1], [0], [0], [1], [0, 0, 1, 1], [], []>} : vector<8x256xf32>, vector<256x128xf32>, vector<8x128xf32> -> vector<8x128xf32>
    %c0_15 = arith.constant 0 : index
    %c0_16 = arith.constant 0 : index
    %20 = vector.load %arg6[%c0_15, %c0_16] : memref<1x128xf32, #tpu.memory_space<vmem>>, vector<1x128xf32>
    %21 = vector.broadcast %20 : vector<1x128xf32> to vector<8x128xf32>
    %22 = arith.addf %19, %21 : vector<8x128xf32>
    %cst_17 = arith.constant 0.000000e+00 : f32
    %23 = vector.broadcast %cst_17 : f32 to vector<8x128xf32>
    %24 = arith.maximumf %22, %23 : vector<8x128xf32>
    %c0_18 = arith.constant 0 : index
    %c0_19 = arith.constant 0 : index
    %25 = vector.load %arg7[%c0_18, %c0_19] : memref<128x128xbf16, #tpu.memory_space<vmem>>, vector<128x128xbf16>
    %26 = arith.extf %25 : vector<128x128xbf16> to vector<128x128xf32>
    %cst_20 = arith.constant dense<0.000000e+00> : vector<8x128xf32>
    %27 = tpu.matmul %24, %26, %cst_20 {dimension_numbers = #tpu.dot_dimension_numbers<[1], [0], [0], [1], [0, 0, 1, 1], [], []>} : vector<8x128xf32>, vector<128x128xf32>, vector<8x128xf32> -> vector<8x128xf32>
    %c0_21 = arith.constant 0 : index
    %c0_22 = arith.constant 0 : index
    %28 = vector.load %arg8[%c0_21, %c0_22] : memref<1x128xf32, #tpu.memory_space<vmem>>, vector<1x128xf32>
    %29 = vector.broadcast %28 : vector<1x128xf32> to vector<8x128xf32>
    %30 = arith.addf %27, %29 : vector<8x128xf32>
    %cst_23 = arith.constant 0.000000e+00 : f32
    %31 = vector.broadcast %cst_23 : f32 to vector<8x128xf32>
    %32 = arith.maximumf %30, %31 : vector<8x128xf32>
    %c0_24 = arith.constant 0 : index
    %c0_25 = arith.constant 0 : index
    %33 = vector.load %arg9[%c0_24, %c0_25] : memref<128x128xbf16, #tpu.memory_space<vmem>>, vector<128x128xbf16>
    %34 = arith.extf %33 : vector<128x128xbf16> to vector<128x128xf32>
    %cst_26 = arith.constant dense<0.000000e+00> : vector<8x128xf32>
    %35 = tpu.matmul %32, %34, %cst_26 {dimension_numbers = #tpu.dot_dimension_numbers<[1], [0], [0], [1], [0, 0, 1, 1], [], []>} : vector<8x128xf32>, vector<128x128xf32>, vector<8x128xf32> -> vector<8x128xf32>
    %c0_27 = arith.constant 0 : index
    %c0_28 = arith.constant 0 : index
    %36 = vector.load %arg10[%c0_27, %c0_28] : memref<1x128xf32, #tpu.memory_space<vmem>>, vector<1x128xf32>
    %37 = vector.broadcast %36 : vector<1x128xf32> to vector<8x128xf32>
    %38 = arith.addf %35, %37 : vector<8x128xf32>
    %cst_29 = arith.constant 0.000000e+00 : f32
    %39 = vector.broadcast %cst_29 : f32 to vector<8x128xf32>
    %40 = arith.maximumf %38, %39 : vector<8x128xf32>
    %c0_30 = arith.constant 0 : index
    %c0_31 = arith.constant 0 : index
    %41 = vector.load %arg11[%c0_30, %c0_31] : memref<128x128xbf16, #tpu.memory_space<vmem>>, vector<128x128xbf16>
    %42 = arith.extf %41 : vector<128x128xbf16> to vector<128x128xf32>
    %cst_32 = arith.constant dense<0.000000e+00> : vector<8x128xf32>
    %43 = tpu.matmul %40, %42, %cst_32 {dimension_numbers = #tpu.dot_dimension_numbers<[1], [0], [0], [1], [0, 0, 1, 1], [], []>} : vector<8x128xf32>, vector<128x128xf32>, vector<8x128xf32> -> vector<8x128xf32>
    %c0_33 = arith.constant 0 : index
    %c0_34 = arith.constant 0 : index
    %44 = vector.load %arg12[%c0_33, %c0_34] : memref<1x128xf32, #tpu.memory_space<vmem>>, vector<1x128xf32>
    %45 = vector.broadcast %44 : vector<1x128xf32> to vector<8x128xf32>
    %46 = arith.addf %43, %45 : vector<8x128xf32>
    %c0_35 = arith.constant 0 : index
    %c0_36 = arith.constant 0 : index
    %47 = vector.load %arg13[%c0_35, %c0_36] : memref<8x128xf32, #tpu.memory_space<vmem>>, vector<8x128xf32>
    tpu.vector_store %arg13[%c0_35, %c0_36], %46 {strides = array<i32>} : memref<8x128xf32, #tpu.memory_space<vmem>>, vector<8x128xf32>,
    return
  }
}

</mosaic_0001>

<llo_original>
// kernel: tpu_custom_call.1
$region0: #{tpu_custom_call.1}
  #allocation0 [shape = 'u32[]', space=smem, size = 0x4, offset = 0x4, fixed_abs, tag = 'smem constant byte address 0x4 - core index']
  #allocation1 [shape = 'u32[144,128]{1,0:T(1,128)}', space=vmem, size = 0x12000, scoped, tag = 'internal scratch']
  %s0 = inlined_call_operand.hbm [shape: f32[8,256], index: 0, kind: input, shape index: {}]
  %s1 = inlined_call_operand.hbm [shape: bf16[256,128], index: 1, kind: input, shape index: {}]
  %s2 = inlined_call_operand.vmem [shape: f32[1,128], index: 2, kind: input, shape index: {}]
  %s3 = inlined_call_operand.hbm [shape: bf16[128,256], index: 3, kind: input, shape index: {}]
  %s4 = inlined_call_operand.vmem [shape: f32[1,256], index: 4, kind: input, shape index: {}]
  %s5 = inlined_call_operand.hbm [shape: bf16[256,128], index: 5, kind: input, shape index: {}]
  %s6 = inlined_call_operand.vmem [shape: f32[1,128], index: 6, kind: input, shape index: {}]
  %s7 = inlined_call_operand.hbm [shape: bf16[128,128], index: 7, kind: input, shape index: {}]
  %s8 = inlined_call_operand.vmem [shape: f32[1,128], index: 8, kind: input, shape index: {}]
  %s9 = inlined_call_operand.hbm [shape: bf16[128,128], index: 9, kind: input, shape index: {}]
  %s10 = inlined_call_operand.vmem [shape: f32[1,128], index: 10, kind: input, shape index: {}]
  %s11 = inlined_call_operand.hbm [shape: bf16[128,128], index: 11, kind: input, shape index: {}]
  %s12 = inlined_call_operand.vmem [shape: f32[1,128], index: 12, kind: input, shape index: {}]
  %s13 = inlined_call_operand.hbm [shape: f32[8,128], index: 13, kind: output, shape index: {}]
  %s14 = sld [smem:[#allocation0]]
  $region90: #{tpu_custom_call.1} parent=0
    _
  %s16 = ssub.s32 1, %s14
  %s17 = scalar_select 0, %s16, %s14
  $region1: #{tpu_custom_call.1} parent=0
    #allocation2 [shape = 'u8[8192]{0}', space=vmem, size = 0x2000, scoped, tag = 'input window, operand 0, single buffered']
    #allocation3 [shape = 's32[1]{0}', space=sflag, size = 0x4, scoped, tag = 'scoped memory for tpu_custom_call.1']
    #allocation4 [shape = 's32[1]{0}', space=sflag, size = 0x4, scoped, tag = 'scoped memory for tpu_custom_call.1']
    #allocation5 [shape = 'u8[65536]{0}', space=vmem, size = 0x10000, scoped, tag = 'input window, operand 1, single buffered']
    #allocation6 [shape = 's32[1]{0}', space=sflag, size = 0x4, scoped, tag = 'scoped memory for tpu_custom_call.1']
    #allocation7 [shape = 'u8[65536]{0}', space=vmem, size = 0x10000, scoped, tag = 'input window, operand 3, single buffered']
    #allocation8 [shape = 'u8[65536]{0}', space=vmem, size = 0x10000, scoped, tag = 'input window, operand 5, single buffered']
    #allocation9 [shape = 's32[1]{0}', space=sflag, size = 0x4, scoped, tag = 'scoped memory for tpu_custom_call.1']
    #allocation10 [shape = 'u8[32768]{0}', space=vmem, size = 0x8000, scoped, tag = 'input window, operand 7, single buffered']
    #allocation11 [shape = 'u8[32768]{0}', space=vmem, size = 0x8000, scoped, tag = 'input window, operand 9, single buffered']
    #allocation12 [shape = 's32[1]{0}', space=sflag, size = 0x4, scoped, tag = 'scoped memory for tpu_custom_call.1']
    #allocation13 [shape = 'u8[32768]{0}', space=vmem, size = 0x8000, scoped, tag = 'input window, operand 11, single buffered']
    #allocation14 [shape = 'u8[4096]{0}', space=vmem, size = 0x1000, scoped, tag = 'output window, operand 0, single buffered']
    %18 = vsyncpa [#allocation3], 0
    %19 = vsyncpa [#allocation6], 0
    %20 = vsyncpa [#allocation9], 0
    %21 = vsyncpa [#allocation12], 0
    %22 = vsyncpa [#allocation4], 0
    // Predicated region
    $region2: #{tpu_custom_call.1} parent=1 // pred_check
      _
    $region3: #{tpu_custom_call.1} parent=1 // pred_check_branch
      %24 = sbr.rel (0) target = $region5
    $region4: #{tpu_custom_call.1} parent=1 // pred_region
      %s26 = ssub.s32 256, 256
      %27 = vsyncadd [#allocation3], %s26
      %s29 = sshll.u32 [#allocation2], 4
      %s30 = int_to_ptr.vmem [resolvable:$true] %s29
      %32 = dma.hbm_to_vmem [thread:$0]  %s0, 256, %s30, [#allocation3]
    $region5: #{tpu_custom_call.1} parent=1 // pred_fallthru
      _
    // Predicated region
    $region6: #{tpu_custom_call.1} parent=1 // pred_check
      _
    $region7: #{tpu_custom_call.1} parent=1 // pred_check_branch
      %34 = sbr.rel (0) target = $region9
    $region8: #{tpu_custom_call.1} parent=1 // pred_region
      %s36 = ssub.s32 2048, 2048
      %37 = vsyncadd [#allocation6], %s36
      %s38 = sshll.u32 [#allocation5], 4
      %s39 = int_to_ptr.vmem [resolvable:$true] %s38
      %44 = dma.hbm_to_vmem [thread:$0]  %s1, 2048, %s39, [#allocation6], 64, 64, 4
    $region9: #{tpu_custom_call.1} parent=1 // pred_fallthru
      _
    // Predicated region
    $region10: #{tpu_custom_call.1} parent=1 // pred_check
      _
    $region11: #{tpu_custom_call.1} parent=1 // pred_check_branch
      %46 = sbr.rel (0) target = $region13
    $region12: #{tpu_custom_call.1} parent=1 // pred_region
      _
    $region13: #{tpu_custom_call.1} parent=1 // pred_fallthru
      _
    // Predicated region
    $region14: #{tpu_custom_call.1} parent=1 // pred_check
      _
    $region15: #{tpu_custom_call.1} parent=1 // pred_check_branch
      %48 = sbr.rel (0) target = $region17
    $region16: #{tpu_custom_call.1} parent=1 // pred_region
      %s50 = ssub.s32 2048, 2048
      %51 = vsyncadd [#allocation6], %s50
      %s52 = sshll.u32 [#allocation7], 4
      %s53 = int_to_ptr.vmem [resolvable:$true] %s52
      %58 = dma.hbm_to_vmem [thread:$0]  %s3, 2048, %s53, [#allocation6], 128, 128, 8
    $region17: #{tpu_custom_call.1} parent=1 // pred_fallthru
      _
    // Predicated region
    $region18: #{tpu_custom_call.1} parent=1 // pred_check
      _
    $region19: #{tpu_custom_call.1} parent=1 // pred_check_branch
      %60 = sbr.rel (0) target = $region21
    $region20: #{tpu_custom_call.1} parent=1 // pred_region
      _
    $region21: #{tpu_custom_call.1} parent=1 // pred_fallthru
      _
    // Predicated region
    $region22: #{tpu_custom_call.1} parent=1 // pred_check
      _
    $region23: #{tpu_custom_call.1} parent=1 // pred_check_branch
      %62 = sbr.rel (0) target = $region25
    $region24: #{tpu_custom_call.1} parent=1 // pred_region
      %s64 = ssub.s32 2048, 2048
      %65 = vsyncadd [#allocation9], %s64
      %s66 = sshll.u32 [#allocation8], 4
      %s67 = int_to_ptr.vmem [resolvable:$true] %s66
      %72 = dma.hbm_to_vmem [thread:$0]  %s5, 2048, %s67, [#allocation9], 64, 64, 4
    $region25: #{tpu_custom_call.1} parent=1 // pred_fallthru
      _
    // Predicated region
    $region26: #{tpu_custom_call.1} parent=1 // pred_check
      _
    $region27: #{tpu_custom_call.1} parent=1 // pred_check_branch
      %74 = sbr.rel (0) target = $region29
    $region28: #{tpu_custom_call.1} parent=1 // pred_region
      _
    $region29: #{tpu_custom_call.1} parent=1 // pred_fallthru
      _
    // Predicated region
    $region30: #{tpu_custom_call.1} parent=1 // pred_check
      _
    $region31: #{tpu_custom_call.1} parent=1 // pred_check_branch
      %76 = sbr.rel (0) target = $region33
    $region32: #{tpu_custom_call.1} parent=1 // pred_region
      %s78 = ssub.s32 1024, 1024
      %79 = vsyncadd [#allocation9], %s78
      %s80 = sshll.u32 [#allocation10], 4
      %s81 = int_to_ptr.vmem [resolvable:$true] %s80
      %86 = dma.hbm_to_vmem [thread:$0]  %s7, 1024, %s81, [#allocation9], 64, 64, 4
    $region33: #{tpu_custom_call.1} parent=1 // pred_fallthru
      _
    // Predicated region
    $region34: #{tpu_custom_call.1} parent=1 // pred_check
      _
    $region35: #{tpu_custom_call.1} parent=1 // pred_check_branch
      %88 = sbr.rel (0) target = $region37
    $region36: #{tpu_custom_call.1} parent=1 // pred_region
      _
    $region37: #{tpu_custom_call.1} parent=1 // pred_fallthru
      _
    // Predicated region
    $region38: #{tpu_custom_call.1} parent=1 // pred_check
      _
    $region39: #{tpu_custom_call.1} parent=1 // pred_check_branch
      %90 = sbr.rel (0) target = $region41
    $region40: #{tpu_custom_call.1} parent=1 // pred_region
      %s92 = ssub.s32 1024, 1024
      %93 = vsyncadd [#allocation12], %s92
      %s94 = sshll.u32 [#allocation11], 4
      %s95 = int_to_ptr.vmem [resolvable:$true] %s94
      %100 = dma.hbm_to_vmem [thread:$0]  %s9, 1024, %s95, [#allocation12], 64, 64, 4
    $region41: #{tpu_custom_call.1} parent=1 // pred_fallthru
      _
    // Predicated region
    $region42: #{tpu_custom_call.1} parent=1 // pred_check
      _
    $region43: #{tpu_custom_call.1} parent=1 // pred_check_branch
      %102 = sbr.rel (0) target = $region45
    $region44: #{tpu_custom_call.1} parent=1 // pred_region
      _
    $region45: #{tpu_custom_call.1} parent=1 // pred_fallthru
      _
    // Predicated region
    $region46: #{tpu_custom_call.1} parent=1 // pred_check
      _
    $region47: #{tpu_custom_call.1} parent=1 // pred_check_branch
      %104 = sbr.rel (0) target = $region49
    $region48: #{tpu_custom_call.1} parent=1 // pred_region
      %s106 = ssub.s32 1024, 1024
      %107 = vsyncadd [#allocation12], %s106
      %s108 = sshll.u32 [#allocation13], 4
      %s109 = int_to_ptr.vmem [resolvable:$true] %s108
      %114 = dma.hbm_to_vmem [thread:$0]  %s11, 1024, %s109, [#allocation12], 64, 64, 4
    $region49: #{tpu_custom_call.1} parent=1 // pred_fallthru
      _
    // Predicated region
    $region50: #{tpu_custom_call.1} parent=1 // pred_check
      _
    $region51: #{tpu_custom_call.1} parent=1 // pred_check_branch
      %116 = sbr.rel (0) target = $region53
    $region52: #{tpu_custom_call.1} parent=1 // pred_region
      _
    $region53: #{tpu_custom_call.1} parent=1 // pred_fallthru
      _
    // Predicated region
    $region54: #{tpu_custom_call.1} parent=1 // pred_check
      _
    $region55: #{tpu_custom_call.1} parent=1 // pred_check_branch
      %118 = sbr.rel (0) target = $region57
    $region56: #{tpu_custom_call.1} parent=1 // pred_region
      %119 = dma.done [#allocation3], 256
    $region57: #{tpu_custom_call.1} parent=1 // pred_fallthru
      _
    // Predicated region
    $region58: #{tpu_custom_call.1} parent=1 // pred_check
      _
    $region59: #{tpu_custom_call.1} parent=1 // pred_check_branch
      %121 = sbr.rel (0) target = $region61
    $region60: #{tpu_custom_call.1} parent=1 // pred_region
      %122 = dma.done [#allocation6], 2048
    $region61: #{tpu_custom_call.1} parent=1 // pred_fallthru
      _
    // Predicated region
    $region62: #{tpu_custom_call.1} parent=1 // pred_check
      _
    $region63: #{tpu_custom_call.1} parent=1 // pred_check_branch
      %124 = sbr.rel (0) target = $region65
    $region64: #{tpu_custom_call.1} parent=1 // pred_region
      %125 = dma.done [#allocation6], 2048
    $region65: #{tpu_custom_call.1} parent=1 // pred_fallthru
      _
    // Predicated region
    $region66: #{tpu_custom_call.1} parent=1 // pred_check
      _
    $region67: #{tpu_custom_call.1} parent=1 // pred_check_branch
      %127 = sbr.rel (0) target = $region69
    $region68: #{tpu_custom_call.1} parent=1 // pred_region
      %128 = dma.done [#allocation9], 2048
    $region69: #{tpu_custom_call.1} parent=1 // pred_fallthru
      _
    // Predicated region
    $region70: #{tpu_custom_call.1} parent=1 // pred_check
      _
    $region71: #{tpu_custom_call.1} parent=1 // pred_check_branch
      %130 = sbr.rel (0) target = $region73
    $region72: #{tpu_custom_call.1} parent=1 // pred_region
      %131 = dma.done [#allocation9], 1024
    $region73: #{tpu_custom_call.1} parent=1 // pred_fallthru
      _
    // Predicated region
    $region74: #{tpu_custom_call.1} parent=1 // pred_check
      _
    $region75: #{tpu_custom_call.1} parent=1 // pred_check_branch
      %133 = sbr.rel (0) target = $region77
    $region76: #{tpu_custom_call.1} parent=1 // pred_region
      %134 = dma.done [#allocation12], 1024
    $region77: #{tpu_custom_call.1} parent=1 // pred_fallthru
      _
    // Predicated region
    $region78: #{tpu_custom_call.1} parent=1 // pred_check
      _
    $region79: #{tpu_custom_call.1} parent=1 // pred_check_branch
      %136 = sbr.rel (0) target = $region81
    $region80: #{tpu_custom_call.1} parent=1 // pred_region
      %137 = dma.done [#allocation12], 1024
    $region81: #{tpu_custom_call.1} parent=1 // pred_fallthru
      _
    %v138 = vld [vmem:[#allocation2] sm:$0xff]
    %v139 = vld [vmem:[#allocation2 + $0x8] sm:$0xff]
    %v140 = vld [vmem:[#allocation5] sm:$0xf]
    %v141 = vld [vmem:[#allocation5 + $0x4] sm:$0xf]
    %v142 = vld [vmem:[#allocation5 + $0x8] sm:$0xf]
    %v143 = vld [vmem:[#allocation5 + $0xc] sm:$0xf]
    %v144 = vld [vmem:[#allocation5 + $0x10] sm:$0xf]
    %v145 = vld [vmem:[#allocation5 + $0x14] sm:$0xf]
    %v146 = vld [vmem:[#allocation5 + $0x18] sm:$0xf]
    %v147 = vld [vmem:[#allocation5 + $0x1c] sm:$0xf]
    %v148 = vld [vmem:[#allocation5 + $0x20] sm:$0xf]
    %v149 = vld [vmem:[#allocation5 + $0x24] sm:$0xf]
    %v150 = vld [vmem:[#allocation5 + $0x28] sm:$0xf]
    %v151 = vld [vmem:[#allocation5 + $0x2c] sm:$0xf]
    %v152 = vld [vmem:[#allocation5 + $0x30] sm:$0xf]
    %v153 = vld [vmem:[#allocation5 + $0x34] sm:$0xf]
    %v154 = vld [vmem:[#allocation5 + $0x38] sm:$0xf]
    %v155 = vld [vmem:[#allocation5 + $0x3c] sm:$0xf]
    %v156 = vld [vmem:[#allocation5 + $0x40] sm:$0xf]
    %v157 = vld [vmem:[#allocation5 + $0x44] sm:$0xf]
    %v158 = vld [vmem:[#allocation5 + $0x48] sm:$0xf]
    %v159 = vld [vmem:[#allocation5 + $0x4c] sm:$0xf]
    %v160 = vld [vmem:[#allocation5 + $0x50] sm:$0xf]
    %v161 = vld [vmem:[#allocation5 + $0x54] sm:$0xf]
    %v162 = vld [vmem:[#allocation5 + $0x58] sm:$0xf]
    %v163 = vld [vmem:[#allocation5 + $0x5c] sm:$0xf]
    %v164 = vld [vmem:[#allocation5 + $0x60] sm:$0xf]
    %v165 = vld [vmem:[#allocation5 + $0x64] sm:$0xf]
    %v166 = vld [vmem:[#allocation5 + $0x68] sm:$0xf]
    %v167 = vld [vmem:[#allocation5 + $0x6c] sm:$0xf]
    %v168 = vld [vmem:[#allocation5 + $0x70] sm:$0xf]
    %v169 = vld [vmem:[#allocation5 + $0x74] sm:$0xf]
    %v170 = vld [vmem:[#allocation5 + $0x78] sm:$0xf]
    %v171 = vld [vmem:[#allocation5 + $0x7c] sm:$0xf]
    %v172 = vunpack.c.l.bf16 %v140
    %v173 = vunpack.c.l.bf16 %v141
    %v174 = vunpack.c.l.bf16 %v142
    %v175 = vunpack.c.l.bf16 %v143
    %v176 = vunpack.c.l.bf16 %v144
    %v177 = vunpack.c.l.bf16 %v145
    %v178 = vunpack.c.l.bf16 %v146
    %v179 = vunpack.c.l.bf16 %v147
    %v180 = vunpack.c.l.bf16 %v148
    %v181 = vunpack.c.l.bf16 %v149
    %v182 = vunpack.c.l.bf16 %v150
    %v183 = vunpack.c.l.bf16 %v151
    %v184 = vunpack.c.l.bf16 %v152
    %v185 = vunpack.c.l.bf16 %v153
    %v186 = vunpack.c.l.bf16 %v154
    %v187 = vunpack.c.l.bf16 %v155
    %v188 = vunpack.c.l.bf16 %v156
    %v189 = vunpack.c.l.bf16 %v157
    %v190 = vunpack.c.l.bf16 %v158
    %v191 = vunpack.c.l.bf16 %v159
    %v192 = vunpack.c.l.bf16 %v160
    %v193 = vunpack.c.l.bf16 %v161
    %v194 = vunpack.c.l.bf16 %v162
    %v195 = vunpack.c.l.bf16 %v163
    %v196 = vunpack.c.l.bf16 %v164
    %v197 = vunpack.c.l.bf16 %v165
    %v198 = vunpack.c.l.bf16 %v166
    %v199 = vunpack.c.l.bf16 %v167
    %v200 = vunpack.c.l.bf16 %v168
    %v201 = vunpack.c.l.bf16 %v169
    %v202 = vunpack.c.l.bf16 %v170
    %v203 = vunpack.c.l.bf16 %v171
    %v204 = vld [vmem:[%s2] sm:$0x1]
    %v206 = vlaneseq
    %v207 = vshrl.u32 %v206, 7
    %v208 = vsub.s32 0, %v207
    %v209 = vrot.slane %v204, %v208
    %211 = vmatprep.subr.mxu0 0.0
    %212 = vmatpush1.msra.mxu0 %v172
    %213 = vmatprep.subr.mxu0 0.0
    %214 = vmatpush1.msra.mxu0 %v173
    %215 = vmatprep.subr.mxu0 0.0
    %216 = vmatpush1.msra.mxu0 %v174
    %217 = vmatprep.subr.mxu0 0.0
    %218 = vmatpush1.msra.mxu0 %v175
    %219 = vmatprep.subr.mxu0 0.0
    %220 = vmatpush1.msra.mxu0 %v176
    %221 = vmatprep.subr.mxu0 0.0
    %222 = vmatpush1.msra.mxu0 %v177
    %223 = vmatprep.subr.mxu0 0.0
    %224 = vmatpush1.msra.mxu0 %v178
    %225 = vmatprep.subr.mxu0 0.0
    %226 = vmatpush1.msra.mxu0 %v179
    %227 = vmatprep.subr.mxu0 0.0
    %228 = vmatpush1.msra.mxu0 %v180
    %229 = vmatprep.subr.mxu0 0.0
    %230 = vmatpush1.msra.mxu0 %v181
    %231 = vmatprep.subr.mxu0 0.0
    %232 = vmatpush1.msra.mxu0 %v182
    %233 = vmatprep.subr.mxu0 0.0
    %234 = vmatpush1.msra.mxu0 %v183
    %235 = vmatprep.subr.mxu0 0.0
    %236 = vmatpush1.msra.mxu0 %v184
    %237 = vmatprep.subr.mxu0 0.0
    %238 = vmatpush1.msra.mxu0 %v185
    %239 = vmatprep.subr.mxu0 0.0
    %240 = vmatpush1.msra.mxu0 %v186
    %241 = vmatprep.subr.mxu0 0.0
    %242 = vmatpush1.msra.mxu0 %v187
    %243 = vmatprep.subr.mxu0 0.0
    %244 = vmatpush1.msra.mxu0 %v188
    %245 = vmatprep.subr.mxu0 0.0
    %246 = vmatpush1.msra.mxu0 %v189
    %247 = vmatprep.subr.mxu0 0.0
    %248 = vmatpush1.msra.mxu0 %v190
    %249 = vmatprep.subr.mxu0 0.0
    %250 = vmatpush1.msra.mxu0 %v191
    %251 = vmatprep.subr.mxu0 0.0
    %252 = vmatpush1.msra.mxu0 %v192
    %253 = vmatprep.subr.mxu0 0.0
    %254 = vmatpush1.msra.mxu0 %v193
    %255 = vmatprep.subr.mxu0 0.0
    %256 = vmatpush1.msra.mxu0 %v194
    %257 = vmatprep.subr.mxu0 0.0
    %258 = vmatpush1.msra.mxu0 %v195
    %259 = vmatprep.subr.mxu0 0.0
    %260 = vmatpush1.msra.mxu0 %v196
    %261 = vmatprep.subr.mxu0 0.0
    %262 = vmatpush1.msra.mxu0 %v197
    %263 = vmatprep.subr.mxu0 0.0
    %264 = vmatpush1.msra.mxu0 %v198
    %265 = vmatprep.subr.mxu0 0.0
    %266 = vmatpush1.msra.mxu0 %v199
    %267 = vmatprep.subr.mxu0 0.0
    %268 = vmatpush1.msra.mxu0 %v200
    %269 = vmatprep.subr.mxu0 0.0
    %270 = vmatpush1.msra.mxu0 %v201
    %271 = vmatprep.subr.mxu0 0.0
    %272 = vmatpush1.msra.mxu0 %v202
    %273 = vmatprep.subr.mxu0 0.0
    %274 = vmatpush1.msra.mxu0 %v203
    %275 = vmatprep.mubr.f32.mxu0 %v139
    %276 = vmatmul.mubr.f32.gmra.mrb[0].mxu0 %v138
    %v277 = vpop.f32.mrb[0].mxu0
    %v278 = vadd.f32 %v209, %v277
    %v279 = vpop.f32.mrb[0].mxu0
    %280 = vdwg.mxu0
    %v281 = vmax.f32 %v278, 0.0
    %v282 = vld [vmem:[#allocation7] sm:$0xff]
    %v283 = vld [vmem:[#allocation7 + $0x8] sm:$0xff]
    %v284 = vld [vmem:[#allocation7 + $0x10] sm:$0xff]
    %v285 = vld [vmem:[#allocation7 + $0x18] sm:$0xff]
    %v286 = vld [vmem:[#allocation7 + $0x20] sm:$0xff]
    %v287 = vld [vmem:[#allocation7 + $0x28] sm:$0xff]
    %v288 = vld [vmem:[#allocation7 + $0x30] sm:$0xff]
    %v289 = vld [vmem:[#allocation7 + $0x38] sm:$0xff]
    %v290 = vld [vmem:[#allocation7 + $0x40] sm:$0xff]
    %v291 = vld [vmem:[#allocation7 + $0x48] sm:$0xff]
    %v292 = vld [vmem:[#allocation7 + $0x50] sm:$0xff]
    %v293 = vld [vmem:[#allocation7 + $0x58] sm:$0xff]
    %v294 = vld [vmem:[#allocation7 + $0x60] sm:$0xff]
    %v295 = vld [vmem:[#allocation7 + $0x68] sm:$0xff]
    %v296 = vld [vmem:[#allocation7 + $0x70] sm:$0xff]
    %v297 = vld [vmem:[#allocation7 + $0x78] sm:$0xff]
    %v298 = vunpack.c.l.bf16 %v282
    %v299 = vunpack.c.h.bf16 %v282
    %v300 = vunpack.c.l.bf16 %v283
    %v301 = vunpack.c.h.bf16 %v283
    %v302 = vunpack.c.l.bf16 %v284
    %v303 = vunpack.c.h.bf16 %v284
    %v304 = vunpack.c.l.bf16 %v285
    %v305 = vunpack.c.h.bf16 %v285
    %v306 = vunpack.c.l.bf16 %v286
    %v307 = vunpack.c.h.bf16 %v286
    %v308 = vunpack.c.l.bf16 %v287
    %v309 = vunpack.c.h.bf16 %v287
    %v310 = vunpack.c.l.bf16 %v288
    %v311 = vunpack.c.h.bf16 %v288
    %v312 = vunpack.c.l.bf16 %v289
    %v313 = vunpack.c.h.bf16 %v289
    %v314 = vunpack.c.l.bf16 %v290
    %v315 = vunpack.c.h.bf16 %v290
    %v316 = vunpack.c.l.bf16 %v291
    %v317 = vunpack.c.h.bf16 %v291
    %v318 = vunpack.c.l.bf16 %v292
    %v319 = vunpack.c.h.bf16 %v292
    %v320 = vunpack.c.l.bf16 %v293
    %v321 = vunpack.c.h.bf16 %v293
    %v322 = vunpack.c.l.bf16 %v294
    %v323 = vunpack.c.h.bf16 %v294
    %v324 = vunpack.c.l.bf16 %v295
    %v325 = vunpack.c.h.bf16 %v295
    %v326 = vunpack.c.l.bf16 %v296
    %v327 = vunpack.c.h.bf16 %v296
    %v328 = vunpack.c.l.bf16 %v297
    %v329 = vunpack.c.h.bf16 %v297
    %v330 = vld [vmem:[%s4] sm:$0x3]
    %v332 = vlaneseq
    %v333 = vshrl.u32 %v332, 7
    %v334 = vsub.s32 0, %v333
    %v335 = vrot.slane %v330, %v334
    %v336 = vlaneseq
    %v337 = vshrl.u32 %v336, 7
    %v338 = vsub.s32 1, %v337
    %v339 = vrot.slane %v330, %v338
    %342 = vmatprep.subr.mxu0 %v299
    %343 = vmatpush1.msra.mxu0 %v298
    %344 = vmatprep.subr.mxu0 %v301
    %345 = vmatpush1.msra.mxu0 %v300
    %346 = vmatprep.subr.mxu0 %v303
    %347 = vmatpush1.msra.mxu0 %v302
    %348 = vmatprep.subr.mxu0 %v305
    %349 = vmatpush1.msra.mxu0 %v304
    %350 = vmatprep.subr.mxu0 %v307
    %351 = vmatpush1.msra.mxu0 %v306
    %352 = vmatprep.subr.mxu0 %v309
    %353 = vmatpush1.msra.mxu0 %v308
    %354 = vmatprep.subr.mxu0 %v311
    %355 = vmatpush1.msra.mxu0 %v310
    %356 = vmatprep.subr.mxu0 %v313
    %357 = vmatpush1.msra.mxu0 %v312
    %358 = vmatprep.subr.mxu0 %v315
    %359 = vmatpush1.msra.mxu0 %v314
    %360 = vmatprep.subr.mxu0 %v317
    %361 = vmatpush1.msra.mxu0 %v316
    %362 = vmatprep.subr.mxu0 %v319
    %363 = vmatpush1.msra.mxu0 %v318
    %364 = vmatprep.subr.mxu0 %v321
    %365 = vmatpush1.msra.mxu0 %v320
    %366 = vmatprep.subr.mxu0 %v323
    %367 = vmatpush1.msra.mxu0 %v322
    %368 = vmatprep.subr.mxu0 %v325
    %369 = vmatpush1.msra.mxu0 %v324
    %370 = vmatprep.subr.mxu0 %v327
    %371 = vmatpush1.msra.mxu0 %v326
    %372 = vmatprep.subr.mxu0 %v329
    %373 = vmatpush1.msra.mxu0 %v328
    %374 = vmatprep.subr.mxu0 0.0
    %375 = vmatpush1.msra.mxu0 0.0
    %376 = vmatprep.subr.mxu0 0.0
    %377 = vmatpush1.msra.mxu0 0.0
    %378 = vmatprep.subr.mxu0 0.0
    %379 = vmatpush1.msra.mxu0 0.0
    %380 = vmatprep.subr.mxu0 0.0
    %381 = vmatpush1.msra.mxu0 0.0
    %382 = vmatprep.subr.mxu0 0.0
    %383 = vmatpush1.msra.mxu0 0.0
    %384 = vmatprep.subr.mxu0 0.0
    %385 = vmatpush1.msra.mxu0 0.0
    %386 = vmatprep.subr.mxu0 0.0
    %387 = vmatpush1.msra.mxu0 0.0
    %388 = vmatprep.subr.mxu0 0.0
    %389 = vmatpush1.msra.mxu0 0.0
    %390 = vmatprep.subr.mxu0 0.0
    %391 = vmatpush1.msra.mxu0 0.0
    %392 = vmatprep.subr.mxu0 0.0
    %393 = vmatpush1.msra.mxu0 0.0
    %394 = vmatprep.subr.mxu0 0.0
    %395 = vmatpush1.msra.mxu0 0.0
    %396 = vmatprep.subr.mxu0 0.0
    %397 = vmatpush1.msra.mxu0 0.0
    %398 = vmatprep.subr.mxu0 0.0
    %399 = vmatpush1.msra.mxu0 0.0
    %400 = vmatprep.subr.mxu0 0.0
    %401 = vmatpush1.msra.mxu0 0.0
    %402 = vmatprep.subr.mxu0 0.0
    %403 = vmatpush1.msra.mxu0 0.0
    %404 = vmatprep.subr.mxu0 0.0
    %405 = vmatpush1.msra.mxu0 0.0
    %406 = vmatprep.mubr.f32.mxu0 0.0
    %407 = vmatmul.mubr.f32.gmra.mrb[0].mxu0 %v281
    %v408 = vpop.f32.mrb[0].mxu0
    %v409 = vadd.f32 %v335, %v408
    %v410 = vpop.f32.mrb[0].mxu0
    %v411 = vadd.f32 %v339, %v410
    %412 = vdwg.mxu0
    %v413 = vmax.f32 %v409, 0.0
    %v414 = vmax.f32 %v411, 0.0
    %v415 = vld [vmem:[#allocation8] sm:$0xf]
    %v416 = vld [vmem:[#allocation8 + $0x4] sm:$0xf]
    %v417 = vld [vmem:[#allocation8 + $0x8] sm:$0xf]
    %v418 = vld [vmem:[#allocation8 + $0xc] sm:$0xf]
    %v419 = vld [vmem:[#allocation8 + $0x10] sm:$0xf]
    %v420 = vld [vmem:[#allocation8 + $0x14] sm:$0xf]
    %v421 = vld [vmem:[#allocation8 + $0x18] sm:$0xf]
    %v422 = vld [vmem:[#allocation8 + $0x1c] sm:$0xf]
    %v423 = vld [vmem:[#allocation8 + $0x20] sm:$0xf]
    %v424 = vld [vmem:[#allocation8 + $0x24] sm:$0xf]
    %v425 = vld [vmem:[#allocation8 + $0x28] sm:$0xf]
    %v426 = vld [vmem:[#allocation8 + $0x2c] sm:$0xf]
    %v427 = vld [vmem:[#allocation8 + $0x30] sm:$0xf]
    %v428 = vld [vmem:[#allocation8 + $0x34] sm:$0xf]
    %v429 = vld [vmem:[#allocation8 + $0x38] sm:$0xf]
    %v430 = vld [vmem:[#allocation8 + $0x3c] sm:$0xf]
    %v431 = vld [vmem:[#allocation8 + $0x40] sm:$0xf]
    %v432 = vld [vmem:[#allocation8 + $0x44] sm:$0xf]
    %v433 = vld [vmem:[#allocation8 + $0x48] sm:$0xf]
    %v434 = vld [vmem:[#allocation8 + $0x4c] sm:$0xf]
    %v435 = vld [vmem:[#allocation8 + $0x50] sm:$0xf]
    %v436 = vld [vmem:[#allocation8 + $0x54] sm:$0xf]
    %v437 = vld [vmem:[#allocation8 + $0x58] sm:$0xf]
    %v438 = vld [vmem:[#allocation8 + $0x5c] sm:$0xf]
    %v439 = vld [vmem:[#allocation8 + $0x60] sm:$0xf]
    %v440 = vld [vmem:[#allocation8 + $0x64] sm:$0xf]
    %v441 = vld [vmem:[#allocation8 + $0x68] sm:$0xf]
    %v442 = vld [vmem:[#allocation8 + $0x6c] sm:$0xf]
    %v443 = vld [vmem:[#allocation8 + $0x70] sm:$0xf]
    %v444 = vld [vmem:[#allocation8 + $0x74] sm:$0xf]
    %v445 = vld [vmem:[#allocation8 + $0x78] sm:$0xf]
    %v446 = vld [vmem:[#allocation8 + $0x7c] sm:$0xf]
    %v447 = vunpack.c.l.bf16 %v415
    %v448 = vunpack.c.l.bf16 %v416
    %v449 = vunpack.c.l.bf16 %v417
    %v450 = vunpack.c.l.bf16 %v418
    %v451 = vunpack.c.l.bf16 %v419
    %v452 = vunpack.c.l.bf16 %v420
    %v453 = vunpack.c.l.bf16 %v421
    %v454 = vunpack.c.l.bf16 %v422
    %v455 = vunpack.c.l.bf16 %v423
    %v456 = vunpack.c.l.bf16 %v424
    %v457 = vunpack.c.l.bf16 %v425
    %v458 = vunpack.c.l.bf16 %v426
    %v459 = vunpack.c.l.bf16 %v427
    %v460 = vunpack.c.l.bf16 %v428
    %v461 = vunpack.c.l.bf16 %v429
    %v462 = vunpack.c.l.bf16 %v430
    %v463 = vunpack.c.l.bf16 %v431
    %v464 = vunpack.c.l.bf16 %v432
    %v465 = vunpack.c.l.bf16 %v433
    %v466 = vunpack.c.l.bf16 %v434
    %v467 = vunpack.c.l.bf16 %v435
    %v468 = vunpack.c.l.bf16 %v436
    %v469 = vunpack.c.l.bf16 %v437
    %v470 = vunpack.c.l.bf16 %v438
    %v471 = vunpack.c.l.bf16 %v439
    %v472 = vunpack.c.l.bf16 %v440
    %v473 = vunpack.c.l.bf16 %v441
    %v474 = vunpack.c.l.bf16 %v442
    %v475 = vunpack.c.l.bf16 %v443
    %v476 = vunpack.c.l.bf16 %v444
    %v477 = vunpack.c.l.bf16 %v445
    %v478 = vunpack.c.l.bf16 %v446
    %v479 = vld [vmem:[%s6] sm:$0x1]
    %v481 = vlaneseq
    %v482 = vshrl.u32 %v481, 7
    %v483 = vsub.s32 0, %v482
    %v484 = vrot.slane %v479, %v483
    %486 = vmatprep.subr.mxu0 0.0
    %487 = vmatpush1.msra.mxu0 %v447
    %488 = vmatprep.subr.mxu0 0.0
    %489 = vmatpush1.msra.mxu0 %v448
    %490 = vmatprep.subr.mxu0 0.0
    %491 = vmatpush1.msra.mxu0 %v449
    %492 = vmatprep.subr.mxu0 0.0
    %493 = vmatpush1.msra.mxu0 %v450
    %494 = vmatprep.subr.mxu0 0.0
    %495 = vmatpush1.msra.mxu0 %v451
    %496 = vmatprep.subr.mxu0 0.0
    %497 = vmatpush1.msra.mxu0 %v452
    %498 = vmatprep.subr.mxu0 0.0
    %499 = vmatpush1.msra.mxu0 %v453
    %500 = vmatprep.subr.mxu0 0.0
    %501 = vmatpush1.msra.mxu0 %v454
    %502 = vmatprep.subr.mxu0 0.0
    %503 = vmatpush1.msra.mxu0 %v455
    %504 = vmatprep.subr.mxu0 0.0
    %505 = vmatpush1.msra.mxu0 %v456
    %506 = vmatprep.subr.mxu0 0.0
    %507 = vmatpush1.msra.mxu0 %v457
    %508 = vmatprep.subr.mxu0 0.0
    %509 = vmatpush1.msra.mxu0 %v458
    %510 = vmatprep.subr.mxu0 0.0
    %511 = vmatpush1.msra.mxu0 %v459
    %512 = vmatprep.subr.mxu0 0.0
    %513 = vmatpush1.msra.mxu0 %v460
    %514 = vmatprep.subr.mxu0 0.0
    %515 = vmatpush1.msra.mxu0 %v461
    %516 = vmatprep.subr.mxu0 0.0
    %517 = vmatpush1.msra.mxu0 %v462
    %518 = vmatprep.subr.mxu0 0.0
    %519 = vmatpush1.msra.mxu0 %v463
    %520 = vmatprep.subr.mxu0 0.0
    %521 = vmatpush1.msra.mxu0 %v464
    %522 = vmatprep.subr.mxu0 0.0
    %523 = vmatpush1.msra.mxu0 %v465
    %524 = vmatprep.subr.mxu0 0.0
    %525 = vmatpush1.msra.mxu0 %v466
    %526 = vmatprep.subr.mxu0 0.0
    %527 = vmatpush1.msra.mxu0 %v467
    %528 = vmatprep.subr.mxu0 0.0
    %529 = vmatpush1.msra.mxu0 %v468
    %530 = vmatprep.subr.mxu0 0.0
    %531 = vmatpush1.msra.mxu0 %v469
    %532 = vmatprep.subr.mxu0 0.0
    %533 = vmatpush1.msra.mxu0 %v470
    %534 = vmatprep.subr.mxu0 0.0
    %535 = vmatpush1.msra.mxu0 %v471
    %536 = vmatprep.subr.mxu0 0.0
    %537 = vmatpush1.msra.mxu0 %v472
    %538 = vmatprep.subr.mxu0 0.0
    %539 = vmatpush1.msra.mxu0 %v473
    %540 = vmatprep.subr.mxu0 0.0
    %541 = vmatpush1.msra.mxu0 %v474
    %542 = vmatprep.subr.mxu0 0.0
    %543 = vmatpush1.msra.mxu0 %v475
    %544 = vmatprep.subr.mxu0 0.0
    %545 = vmatpush1.msra.mxu0 %v476
    %546 = vmatprep.subr.mxu0 0.0
    %547 = vmatpush1.msra.mxu0 %v477
    %548 = vmatprep.subr.mxu0 0.0
    %549 = vmatpush1.msra.mxu0 %v478
    %550 = vmatprep.mubr.f32.mxu0 %v414
    %551 = vmatmul.mubr.f32.gmra.mrb[0].mxu0 %v413
    %v552 = vpop.f32.mrb[0].mxu0
    %v553 = vadd.f32 %v484, %v552
    %v554 = vpop.f32.mrb[0].mxu0
    %555 = vdwg.mxu0
    %v556 = vmax.f32 %v553, 0.0
    %v557 = vld [vmem:[#allocation10] sm:$0xf]
    %v558 = vld [vmem:[#allocation10 + $0x4] sm:$0xf]
    %v559 = vld [vmem:[#allocation10 + $0x8] sm:$0xf]
    %v560 = vld [vmem:[#allocation10 + $0xc] sm:$0xf]
    %v561 = vld [vmem:[#allocation10 + $0x10] sm:$0xf]
    %v562 = vld [vmem:[#allocation10 + $0x14] sm:$0xf]
    %v563 = vld [vmem:[#allocation10 + $0x18] sm:$0xf]
    %v564 = vld [vmem:[#allocation10 + $0x1c] sm:$0xf]
    %v565 = vld [vmem:[#allocation10 + $0x20] sm:$0xf]
    %v566 = vld [vmem:[#allocation10 + $0x24] sm:$0xf]
    %v567 = vld [vmem:[#allocation10 + $0x28] sm:$0xf]
    %v568 = vld [vmem:[#allocation10 + $0x2c] sm:$0xf]
    %v569 = vld [vmem:[#allocation10 + $0x30] sm:$0xf]
    %v570 = vld [vmem:[#allocation10 + $0x34] sm:$0xf]
    %v571 = vld [vmem:[#allocation10 + $0x38] sm:$0xf]
    %v572 = vld [vmem:[#allocation10 + $0x3c] sm:$0xf]
    %v573 = vunpack.c.l.bf16 %v557
    %v574 = vunpack.c.l.bf16 %v558
    %v575 = vunpack.c.l.bf16 %v559
    %v576 = vunpack.c.l.bf16 %v560
    %v577 = vunpack.c.l.bf16 %v561
    %v578 = vunpack.c.l.bf16 %v562
    %v579 = vunpack.c.l.bf16 %v563
    %v580 = vunpack.c.l.bf16 %v564
    %v581 = vunpack.c.l.bf16 %v565
    %v582 = vunpack.c.l.bf16 %v566
    %v583 = vunpack.c.l.bf16 %v567
    %v584 = vunpack.c.l.bf16 %v568
    %v585 = vunpack.c.l.bf16 %v569
    %v586 = vunpack.c.l.bf16 %v570
    %v587 = vunpack.c.l.bf16 %v571
    %v588 = vunpack.c.l.bf16 %v572
    %v589 = vld [vmem:[%s8] sm:$0x1]
    %v591 = vlaneseq
    %v592 = vshrl.u32 %v591, 7
    %v593 = vsub.s32 0, %v592
    %v594 = vrot.slane %v589, %v593
    %596 = vmatprep.subr.mxu0 0.0
    %597 = vmatpush1.msra.mxu0 %v573
    %598 = vmatprep.subr.mxu0 0.0
    %599 = vmatpush1.msra.mxu0 %v574
    %600 = vmatprep.subr.mxu0 0.0
    %601 = vmatpush1.msra.mxu0 %v575
    %602 = vmatprep.subr.mxu0 0.0
    %603 = vmatpush1.msra.mxu0 %v576
    %604 = vmatprep.subr.mxu0 0.0
    %605 = vmatpush1.msra.mxu0 %v577
    %606 = vmatprep.subr.mxu0 0.0
    %607 = vmatpush1.msra.mxu0 %v578
    %608 = vmatprep.subr.mxu0 0.0
    %609 = vmatpush1.msra.mxu0 %v579
    %610 = vmatprep.subr.mxu0 0.0
    %611 = vmatpush1.msra.mxu0 %v580
    %612 = vmatprep.subr.mxu0 0.0
    %613 = vmatpush1.msra.mxu0 %v581
    %614 = vmatprep.subr.mxu0 0.0
    %615 = vmatpush1.msra.mxu0 %v582
    %616 = vmatprep.subr.mxu0 0.0
    %617 = vmatpush1.msra.mxu0 %v583
    %618 = vmatprep.subr.mxu0 0.0
    %619 = vmatpush1.msra.mxu0 %v584
    %620 = vmatprep.subr.mxu0 0.0
    %621 = vmatpush1.msra.mxu0 %v585
    %622 = vmatprep.subr.mxu0 0.0
    %623 = vmatpush1.msra.mxu0 %v586
    %624 = vmatprep.subr.mxu0 0.0
    %625 = vmatpush1.msra.mxu0 %v587
    %626 = vmatprep.subr.mxu0 0.0
    %627 = vmatpush1.msra.mxu0 %v588
    %628 = vmatprep.subr.mxu0 0.0
    %629 = vmatpush1.msra.mxu0 0.0
    %630 = vmatprep.subr.mxu0 0.0
    %631 = vmatpush1.msra.mxu0 0.0
    %632 = vmatprep.subr.mxu0 0.0
    %633 = vmatpush1.msra.mxu0 0.0
    %634 = vmatprep.subr.mxu0 0.0
    %635 = vmatpush1.msra.mxu0 0.0
    %636 = vmatprep.subr.mxu0 0.0
    %637 = vmatpush1.msra.mxu0 0.0
    %638 = vmatprep.subr.mxu0 0.0
    %639 = vmatpush1.msra.mxu0 0.0
    %640 = vmatprep.subr.mxu0 0.0
    %641 = vmatpush1.msra.mxu0 0.0
    %642 = vmatprep.subr.mxu0 0.0
    %643 = vmatpush1.msra.mxu0 0.0
    %644 = vmatprep.subr.mxu0 0.0
    %645 = vmatpush1.msra.mxu0 0.0
    %646 = vmatprep.subr.mxu0 0.0
    %647 = vmatpush1.msra.mxu0 0.0
    %648 = vmatprep.subr.mxu0 0.0
    %649 = vmatpush1.msra.mxu0 0.0
    %650 = vmatprep.subr.mxu0 0.0
    %651 = vmatpush1.msra.mxu0 0.0
    %652 = vmatprep.subr.mxu0 0.0
    %653 = vmatpush1.msra.mxu0 0.0
    %654 = vmatprep.subr.mxu0 0.0
    %655 = vmatpush1.msra.mxu0 0.0
    %656 = vmatprep.subr.mxu0 0.0
    %657 = vmatpush1.msra.mxu0 0.0
    %658 = vmatprep.subr.mxu0 0.0
    %659 = vmatpush1.msra.mxu0 0.0
    %660 = vmatprep.mubr.f32.mxu0 0.0
    %661 = vmatmul.mubr.f32.gmra.mrb[0].mxu0 %v556
    %v662 = vpop.f32.mrb[0].mxu0
    %v663 = vadd.f32 %v594, %v662
    %v664 = vpop.f32.mrb[0].mxu0
    %665 = vdwg.mxu0
    %v666 = vmax.f32 %v663, 0.0
    %v667 = vld [vmem:[#allocation11] sm:$0xf]
    %v668 = vld [vmem:[#allocation11 + $0x4] sm:$0xf]
    %v669 = vld [vmem:[#allocation11 + $0x8] sm:$0xf]
    %v670 = vld [vmem:[#allocation11 + $0xc] sm:$0xf]
    %v671 = vld [vmem:[#allocation11 + $0x10] sm:$0xf]
    %v672 = vld [vmem:[#allocation11 + $0x14] sm:$0xf]
    %v673 = vld [vmem:[#allocation11 + $0x18] sm:$0xf]
    %v674 = vld [vmem:[#allocation11 + $0x1c] sm:$0xf]
    %v675 = vld [vmem:[#allocation11 + $0x20] sm:$0xf]
    %v676 = vld [vmem:[#allocation11 + $0x24] sm:$0xf]
    %v677 = vld [vmem:[#allocation11 + $0x28] sm:$0xf]
    %v678 = vld [vmem:[#allocation11 + $0x2c] sm:$0xf]
    %v679 = vld [vmem:[#allocation11 + $0x30] sm:$0xf]
    %v680 = vld [vmem:[#allocation11 + $0x34] sm:$0xf]
    %v681 = vld [vmem:[#allocation11 + $0x38] sm:$0xf]
    %v682 = vld [vmem:[#allocation11 + $0x3c] sm:$0xf]
    %v683 = vunpack.c.l.bf16 %v667
    %v684 = vunpack.c.l.bf16 %v668
    %v685 = vunpack.c.l.bf16 %v669
    %v686 = vunpack.c.l.bf16 %v670
    %v687 = vunpack.c.l.bf16 %v671
    %v688 = vunpack.c.l.bf16 %v672
    %v689 = vunpack.c.l.bf16 %v673
    %v690 = vunpack.c.l.bf16 %v674
    %v691 = vunpack.c.l.bf16 %v675
    %v692 = vunpack.c.l.bf16 %v676
    %v693 = vunpack.c.l.bf16 %v677
    %v694 = vunpack.c.l.bf16 %v678
    %v695 = vunpack.c.l.bf16 %v679
    %v696 = vunpack.c.l.bf16 %v680
    %v697 = vunpack.c.l.bf16 %v681
    %v698 = vunpack.c.l.bf16 %v682
    %v699 = vld [vmem:[%s10] sm:$0x1]
    %v701 = vlaneseq
    %v702 = vshrl.u32 %v701, 7
    %v703 = vsub.s32 0, %v702
    %v704 = vrot.slane %v699, %v703
    %706 = vmatprep.subr.mxu0 0.0
    %707 = vmatpush1.msra.mxu0 %v683
    %708 = vmatprep.subr.mxu0 0.0
    %709 = vmatpush1.msra.mxu0 %v684
    %710 = vmatprep.subr.mxu0 0.0
    %711 = vmatpush1.msra.mxu0 %v685
    %712 = vmatprep.subr.mxu0 0.0
    %713 = vmatpush1.msra.mxu0 %v686
    %714 = vmatprep.subr.mxu0 0.0
    %715 = vmatpush1.msra.mxu0 %v687
    %716 = vmatprep.subr.mxu0 0.0
    %717 = vmatpush1.msra.mxu0 %v688
    %718 = vmatprep.subr.mxu0 0.0
    %719 = vmatpush1.msra.mxu0 %v689
    %720 = vmatprep.subr.mxu0 0.0
    %721 = vmatpush1.msra.mxu0 %v690
    %722 = vmatprep.subr.mxu0 0.0
    %723 = vmatpush1.msra.mxu0 %v691
    %724 = vmatprep.subr.mxu0 0.0
    %725 = vmatpush1.msra.mxu0 %v692
    %726 = vmatprep.subr.mxu0 0.0
    %727 = vmatpush1.msra.mxu0 %v693
    %728 = vmatprep.subr.mxu0 0.0
    %729 = vmatpush1.msra.mxu0 %v694
    %730 = vmatprep.subr.mxu0 0.0
    %731 = vmatpush1.msra.mxu0 %v695
    %732 = vmatprep.subr.mxu0 0.0
    %733 = vmatpush1.msra.mxu0 %v696
    %734 = vmatprep.subr.mxu0 0.0
    %735 = vmatpush1.msra.mxu0 %v697
    %736 = vmatprep.subr.mxu0 0.0
    %737 = vmatpush1.msra.mxu0 %v698
    %738 = vmatprep.subr.mxu0 0.0
    %739 = vmatpush1.msra.mxu0 0.0
    %740 = vmatprep.subr.mxu0 0.0
    %741 = vmatpush1.msra.mxu0 0.0
    %742 = vmatprep.subr.mxu0 0.0
    %743 = vmatpush1.msra.mxu0 0.0
    %744 = vmatprep.subr.mxu0 0.0
    %745 = vmatpush1.msra.mxu0 0.0
    %746 = vmatprep.subr.mxu0 0.0
    %747 = vmatpush1.msra.mxu0 0.0
    %748 = vmatprep.subr.mxu0 0.0
    %749 = vmatpush1.msra.mxu0 0.0
    %750 = vmatprep.subr.mxu0 0.0
    %751 = vmatpush1.msra.mxu0 0.0
    %752 = vmatprep.subr.mxu0 0.0
    %753 = vmatpush1.msra.mxu0 0.0
    %754 = vmatprep.subr.mxu0 0.0
    %755 = vmatpush1.msra.mxu0 0.0
    %756 = vmatprep.subr.mxu0 0.0
    %757 = vmatpush1.msra.mxu0 0.0
    %758 = vmatprep.subr.mxu0 0.0
    %759 = vmatpush1.msra.mxu0 0.0
    %760 = vmatprep.subr.mxu0 0.0
    %761 = vmatpush1.msra.mxu0 0.0
    %762 = vmatprep.subr.mxu0 0.0
    %763 = vmatpush1.msra.mxu0 0.0
    %764 = vmatprep.subr.mxu0 0.0
    %765 = vmatpush1.msra.mxu0 0.0
    %766 = vmatprep.subr.mxu0 0.0
    %767 = vmatpush1.msra.mxu0 0.0
    %768 = vmatprep.subr.mxu0 0.0
    %769 = vmatpush1.msra.mxu0 0.0
    %770 = vmatprep.mubr.f32.mxu0 0.0
    %771 = vmatmul.mubr.f32.gmra.mrb[0].mxu0 %v666
    %v772 = vpop.f32.mrb[0].mxu0
    %v773 = vadd.f32 %v704, %v772
    %v774 = vpop.f32.mrb[0].mxu0
    %775 = vdwg.mxu0
    %v776 = vmax.f32 %v773, 0.0
    %v777 = vld [vmem:[#allocation13] sm:$0xf]
    %v778 = vld [vmem:[#allocation13 + $0x4] sm:$0xf]
    %v779 = vld [vmem:[#allocation13 + $0x8] sm:$0xf]
    %v780 = vld [vmem:[#allocation13 + $0xc] sm:$0xf]
    %v781 = vld [vmem:[#allocation13 + $0x10] sm:$0xf]
    %v782 = vld [vmem:[#allocation13 + $0x14] sm:$0xf]
    %v783 = vld [vmem:[#allocation13 + $0x18] sm:$0xf]
    %v784 = vld [vmem:[#allocation13 + $0x1c] sm:$0xf]
    %v785 = vld [vmem:[#allocation13 + $0x20] sm:$0xf]
    %v786 = vld [vmem:[#allocation13 + $0x24] sm:$0xf]
    %v787 = vld [vmem:[#allocation13 + $0x28] sm:$0xf]
    %v788 = vld [vmem:[#allocation13 + $0x2c] sm:$0xf]
    %v789 = vld [vmem:[#allocation13 + $0x30] sm:$0xf]
    %v790 = vld [vmem:[#allocation13 + $0x34] sm:$0xf]
    %v791 = vld [vmem:[#allocation13 + $0x38] sm:$0xf]
    %v792 = vld [vmem:[#allocation13 + $0x3c] sm:$0xf]
    %v793 = vunpack.c.l.bf16 %v777
    %v794 = vunpack.c.l.bf16 %v778
    %v795 = vunpack.c.l.bf16 %v779
    %v796 = vunpack.c.l.bf16 %v780
    %v797 = vunpack.c.l.bf16 %v781
    %v798 = vunpack.c.l.bf16 %v782
    %v799 = vunpack.c.l.bf16 %v783
    %v800 = vunpack.c.l.bf16 %v784
    %v801 = vunpack.c.l.bf16 %v785
    %v802 = vunpack.c.l.bf16 %v786
    %v803 = vunpack.c.l.bf16 %v787
    %v804 = vunpack.c.l.bf16 %v788
    %v805 = vunpack.c.l.bf16 %v789
    %v806 = vunpack.c.l.bf16 %v790
    %v807 = vunpack.c.l.bf16 %v791
    %v808 = vunpack.c.l.bf16 %v792
    %v809 = vld [vmem:[%s12] sm:$0x1]
    %v811 = vlaneseq
    %v812 = vshrl.u32 %v811, 7
    %v813 = vsub.s32 0, %v812
    %v814 = vrot.slane %v809, %v813
    %816 = vmatprep.subr.mxu0 0.0
    %817 = vmatpush1.msra.mxu0 %v793
    %818 = vmatprep.subr.mxu0 0.0
    %819 = vmatpush1.msra.mxu0 %v794
    %820 = vmatprep.subr.mxu0 0.0
    %821 = vmatpush1.msra.mxu0 %v795
    %822 = vmatprep.subr.mxu0 0.0
    %823 = vmatpush1.msra.mxu0 %v796
    %824 = vmatprep.subr.mxu0 0.0
    %825 = vmatpush1.msra.mxu0 %v797
    %826 = vmatprep.subr.mxu0 0.0
    %827 = vmatpush1.msra.mxu0 %v798
    %828 = vmatprep.subr.mxu0 0.0
    %829 = vmatpush1.msra.mxu0 %v799
    %830 = vmatprep.subr.mxu0 0.0
    %831 = vmatpush1.msra.mxu0 %v800
    %832 = vmatprep.subr.mxu0 0.0
    %833 = vmatpush1.msra.mxu0 %v801
    %834 = vmatprep.subr.mxu0 0.0
    %835 = vmatpush1.msra.mxu0 %v802
    %836 = vmatprep.subr.mxu0 0.0
    %837 = vmatpush1.msra.mxu0 %v803
    %838 = vmatprep.subr.mxu0 0.0
    %839 = vmatpush1.msra.mxu0 %v804
    %840 = vmatprep.subr.mxu0 0.0
    %841 = vmatpush1.msra.mxu0 %v805
    %842 = vmatprep.subr.mxu0 0.0
    %843 = vmatpush1.msra.mxu0 %v806
    %844 = vmatprep.subr.mxu0 0.0
    %845 = vmatpush1.msra.mxu0 %v807
    %846 = vmatprep.subr.mxu0 0.0
    %847 = vmatpush1.msra.mxu0 %v808
    %848 = vmatprep.subr.mxu0 0.0
    %849 = vmatpush1.msra.mxu0 0.0
    %850 = vmatprep.subr.mxu0 0.0
    %851 = vmatpush1.msra.mxu0 0.0
    %852 = vmatprep.subr.mxu0 0.0
    %853 = vmatpush1.msra.mxu0 0.0
    %854 = vmatprep.subr.mxu0 0.0
    %855 = vmatpush1.msra.mxu0 0.0
    %856 = vmatprep.subr.mxu0 0.0
    %857 = vmatpush1.msra.mxu0 0.0
    %858 = vmatprep.subr.mxu0 0.0
    %859 = vmatpush1.msra.mxu0 0.0
    %860 = vmatprep.subr.mxu0 0.0
    %861 = vmatpush1.msra.mxu0 0.0
    %862 = vmatprep.subr.mxu0 0.0
    %863 = vmatpush1.msra.mxu0 0.0
    %864 = vmatprep.subr.mxu0 0.0
    %865 = vmatpush1.msra.mxu0 0.0
    %866 = vmatprep.subr.mxu0 0.0
    %867 = vmatpush1.msra.mxu0 0.0
    %868 = vmatprep.subr.mxu0 0.0
    %869 = vmatpush1.msra.mxu0 0.0
    %870 = vmatprep.subr.mxu0 0.0
    %871 = vmatpush1.msra.mxu0 0.0
    %872 = vmatprep.subr.mxu0 0.0
    %873 = vmatpush1.msra.mxu0 0.0
    %874 = vmatprep.subr.mxu0 0.0
    %875 = vmatpush1.msra.mxu0 0.0
    %876 = vmatprep.subr.mxu0 0.0
    %877 = vmatpush1.msra.mxu0 0.0
    %878 = vmatprep.subr.mxu0 0.0
    %879 = vmatpush1.msra.mxu0 0.0
    %880 = vmatprep.mubr.f32.mxu0 0.0
    %881 = vmatmul.mubr.f32.gmra.mrb[0].mxu0 %v776
    %v882 = vpop.f32.mrb[0].mxu0
    %v883 = vadd.f32 %v814, %v882
    %v884 = vpop.f32.mrb[0].mxu0
    %885 = vdwg.mxu0
    %886 = vst [vmem:[#allocation14] sm:$0xff] %v883
    // Predicated region
    $region82: #{tpu_custom_call.1} parent=1 // pred_check
      _
    $region83: #{tpu_custom_call.1} parent=1 // pred_check_branch
      %888 = sbr.rel (0) target = $region85
    $region84: #{tpu_custom_call.1} parent=1 // pred_region
      %s890 = ssub.s32 128, 128
      %891 = vsyncadd [#allocation4], %s890
      %s893 = sshll.u32 [#allocation14], 4
      %s894 = int_to_ptr.vmem [resolvable:$true] %s893
      %896 = dma.vmem_to_hbm [thread:$0]  %s894, 128, %s13, [#allocation4]
    $region85: #{tpu_custom_call.1} parent=1 // pred_fallthru
      _
    // Predicated region
    $region86: #{tpu_custom_call.1} parent=1 // pred_check
      _
    $region87: #{tpu_custom_call.1} parent=1 // pred_check_branch
      %898 = sbr.rel (0) target = $region89
    $region88: #{tpu_custom_call.1} parent=1 // pred_region
      %899 = dma.done [#allocation4], 128
    $region89: #{tpu_custom_call.1} parent=1 // pred_fallthru
      _
    %900 = vsyncpa [#allocation3], 1
    %901 = vsyncpa [#allocation6], 1
    %902 = vsyncpa [#allocation9], 1
    %903 = vsyncpa [#allocation12], 1
    %904 = vsyncpa [#allocation4], 1

</llo_original>
